<compile_context>
chip_gen: v6e
topology: v6e:2x2x1
jax: 0.10.0
libtpu: 0.0.40
codegen_flags: <defaults>
</compile_context>

<pallas_src>
import functools

import jax
import jax.numpy as jnp
from jax.experimental import pallas as pl
from jax.experimental.pallas import tpu as pltpu

# ---- static config (mirrors Args().opts of the original repo) ---------------
ANCHORS_NUM = 5
VOC_CLASSES_LEN = 20
# Standard YOLOv2-VOC anchors (w, h) in grid-cell units.
ANCHORS = jnp.array(
    [[1.19, 1.98], [2.79, 4.59], [4.53, 8.92], [8.06, 5.29], [10.32, 10.65]],
    dtype=jnp.float32,
)
IOU_EPS = 1e-14  # TODO(synk): exact eps of the repo's iou_pred_gt is not shown.

LANE = 128
DEFAULT_TILE_N = 512  # big enough to amortize per-step overhead, small enough
                      # to keep the class-CE working set within the vreg file.


def _yolo_loss_kernel(small_ref, cls_ref, ga_ref, out_ref, *, stride, input_size):
    # small rows: 0:4 t_pred(tx,ty,tw,th), 4:8 t_gt, 8 conf logit, 9 cls_gt,
    #             10 scale, 11:15 gt box (x1,y1,x2,y2), 15 valid mask
    sm = small_ref[0]        # [16, T]
    cls = cls_ref[0]         # [C, T]  class logits
    ga = ga_ref[...]         # [4, T]  grid_x, grid_y, anchor_w, anchor_h

    stride_f = jnp.float32(stride)
    inv_in = jnp.float32(1.0 / input_size)

    tx, ty = sm[0:1], sm[1:2]
    tw, th = sm[2:3], sm[3:4]
    conf_p = sm[8:9]
    cls_gt = sm[9:10]
    scale_gt = sm[10:11]
    gx1, gy1, gx2, gy2 = sm[11:12], sm[12:13], sm[13:14], sm[14:15]
    valid = sm[15:16]
    gx, gy, aw, ah = ga[0:1], ga[1:2], ga[2:3], ga[3:4]

    # decode_xy_wh / decode_boxes (the '+ anchors_wh' reproduces the reference
    # code exactly, even though classic YOLOv2 would multiply).
    cx = (jax.nn.sigmoid(tx) + gx) * stride_f
    cy = (jax.nn.sigmoid(ty) + gy) * stride_f
    w = (jnp.exp(tw) + aw) * stride_f
    h = (jnp.exp(th) + ah) * stride_f
    px1 = (cx - 0.5 * w) * inv_in
    py1 = (cy - 0.5 * h) * inv_in
    px2 = (cx + 0.5 * w) * inv_in
    py2 = (cy + 0.5 * h) * inv_in

    # IoU(pred, gt) -> conf_gt (decode_gt); divide via EUP approx reciprocal.
    ix1 = jnp.maximum(px1, gx1)
    iy1 = jnp.maximum(py1, gy1)
    ix2 = jnp.minimum(px2, gx2)
    iy2 = jnp.minimum(py2, gy2)
    inter = jnp.maximum(ix2 - ix1, 0.0) * jnp.maximum(iy2 - iy1, 0.0)
    area_p = (px2 - px1) * (py2 - py1)
    area_g = (gx2 - gx1) * (gy2 - gy1)
    denom = area_p + area_g - inter + jnp.float32(IOU_EPS)
    conf_gt = inter * pl.reciprocal(denom, approx=True)

    neg = (scale_gt < 0.0).astype(jnp.float32)
    pos = (scale_gt > 0.0).astype(jnp.float32)

    # 1) no-object confidence loss: MSE(0, conf_pred) masked by negatives
    no_obj_lane = conf_p * conf_p * neg

    # 3) object confidence loss: MSE(conf_pred, IoU) masked by positives
    dc = conf_p - conf_gt
    obj_conf_lane = dc * dc * pos

    # 2) coordinate loss: sum_k (t_gt - t_pred)^2, masked and scaled
    d = sm[4:8] - sm[0:4]
    coord_lane = jnp.sum(d * d, axis=0, keepdims=True) * pos * scale_gt

    # 4) class cross-entropy (unmasked in the reference forward; `valid` only
    #    removes the lane-padding introduced for tiling).
    m = jnp.max(cls, axis=0, keepdims=True)
    lse = m + jnp.log(jnp.sum(jnp.exp(cls - m), axis=0, keepdims=True))
    cidx = jax.lax.broadcasted_iota(jnp.int32, cls.shape, 0).astype(jnp.float32)
    picked = jnp.sum(jnp.where(cidx == cls_gt, cls, 0.0), axis=0, keepdims=True)
    ce_lane = (lse - picked) * valid

    total = jnp.sum(no_obj_lane + obj_conf_lane + coord_lane + ce_lane)

    # Lane-dense unmasked 128-lane store of the per-tile partial sum (lane 0).
    lane = jax.lax.broadcasted_iota(jnp.int32, (1, LANE), 1)
    out_ref[0, 0] = jnp.where(lane == 0, total, 0.0)


def yolo_v2_loss(pred, labels, *, input_size, stride=32, tile_n=DEFAULT_TILE_N):
    """pred: [B, hs*ws, A*(1+C+4)], labels: [B, hs*ws*A, 11] -> scalar loss."""
    A, C = ANCHORS_NUM, VOC_CLASSES_LEN
    B, HW, INFO = pred.shape
    assert INFO == A * (1 + C + 4)
    N = HW * A
    hs = ws = input_size // stride
    assert hs * ws == HW

    pred = pred.astype(jnp.float32)
    labels = labels.astype(jnp.float32)

    # lane tiling: pad N up to a multiple of the lane tile
    n128 = ((N + LANE - 1) // LANE) * LANE
    tile = min(tile_n, n128)
    n_pad = ((N + tile - 1) // tile) * tile
    num_tiles = n_pad // tile
    pad = n_pad - N

    # decode_pred slicing (torch .view == row-major reshape) + single relayout
    # into the lane-dense [feature, N] layout the kernel consumes.
    conf_pred = pred[:, :, :A].reshape(B, 1, N)                           # [B,1,N]
    t_pred = jnp.transpose(pred[:, :, A * (1 + C):].reshape(B, N, 4),
                           (0, 2, 1))                                      # [B,4,N]
    cls_logits = jnp.transpose(pred[:, :, A:A * (1 + C)].reshape(B, N, C),
                               (0, 2, 1))                                  # [B,C,N]
    lab_t = jnp.transpose(labels, (0, 2, 1))                               # [B,11,N]
    valid = jnp.ones((B, 1, N), jnp.float32)

    # pack all small per-box features into a single 16-sublane array
    small = jnp.concatenate(
        [t_pred,                # rows 0:4  t_pred
         lab_t[:, 2:6],         # rows 4:8  t_gt
         conf_pred,             # row  8    conf logit
         lab_t[:, 1:2],         # row  9    gt class
         lab_t[:, 6:7],         # row 10    scale
         lab_t[:, 7:11],        # rows 11:15 gt box
         valid],                # row 15    validity mask
        axis=1)                                                            # [B,16,N]

    small = jnp.pad(small, ((0, 0), (0, 0), (0, pad)))
    cls_logits = jnp.pad(cls_logits, ((0, 0), (0, 0), (0, pad)))

    # generate_grid -> packed [4, n_pad] grid/anchor constants
    gy, gx = jnp.meshgrid(jnp.arange(hs), jnp.arange(ws), indexing="ij")
    grid_xy = jnp.stack([gx, gy], axis=-1).astype(jnp.float32)             # [hs,ws,2]
    grid_xy = jnp.broadcast_to(grid_xy.reshape(HW, 1, 2), (HW, A, 2)).reshape(N, 2)
    anchors = jnp.broadcast_to(ANCHORS[None], (HW, A, 2)).reshape(N, 2)
    ga = jnp.concatenate([grid_xy, anchors], axis=-1).T                    # [4, N]
    ga = jnp.pad(ga, ((0, 0), (0, pad)))

    kernel = functools.partial(
        _yolo_loss_kernel, stride=float(stride), input_size=float(input_size))

    out = pl.pallas_call(
        kernel,
        out_shape=jax.ShapeDtypeStruct((B, num_tiles, 1, LANE), jnp.float32),
        grid=(B, num_tiles),
        in_specs=[
            pl.BlockSpec((1, 16, tile), lambda b, t: (b, 0, t)),
            pl.BlockSpec((1, C, tile), lambda b, t: (b, 0, t)),
            pl.BlockSpec((4, tile), lambda b, t: (0, t)),
        ],
        out_specs=pl.BlockSpec((1, 1, 1, LANE), lambda b, t: (b, t, 0, 0)),
        compiler_params=pltpu.CompilerParams(
            dimension_semantics=("parallel", "parallel")),
    )(small, cls_logits, ga)

    return jnp.sum(out) / B


# ---- pure-JAX reference (mirrors the PyTorch forward) for verification ------
def _ref_loss(pred, labels, *, input_size, stride=32):
    A, C = ANCHORS_NUM, VOC_CLASSES_LEN
    B, HW, _ = pred.shape
    N = HW * A
    hs = ws = input_size // stride

    gy, gx = jnp.meshgrid(jnp.arange(hs), jnp.arange(ws), indexing="ij")
    grid_xy = jnp.stack([gx, gy], -1).astype(jnp.float32).reshape(1, HW, 1, 2)
    anchors_wh = jnp.broadcast_to(ANCHORS[None], (HW, A, 2))[None]

    conf_pred = pred[:, :, :A].reshape(B, N)
    cls_pred = pred[:, :, A:A * (1 + C)].reshape(B, N, C)
    t_pred = pred[:, :, A * (1 + C):].reshape(B, HW, A, 4)

    cxcy = jax.nn.sigmoid(t_pred[..., :2]) + grid_xy
    wh = jnp.exp(t_pred[..., 2:]) + anchors_wh
    xywh = jnp.concatenate([cxcy, wh], -1).reshape(B, N, 4) * stride
    boxes_pred = jnp.concatenate(
        [xywh[..., :2] - xywh[..., 2:] * 0.5, xywh[..., :2] + xywh[..., 2:] * 0.5],
        -1) / input_size
    t_pred_flat = t_pred.reshape(B, N, 4)

    boxes_gt = labels[:, :, 7:]
    ixy1 = jnp.maximum(boxes_pred[..., :2], boxes_gt[..., :2])
    ixy2 = jnp.minimum(boxes_pred[..., 2:], boxes_gt[..., 2:])
    iwh = jnp.maximum(ixy2 - ixy1, 0.0)
    inter = iwh[..., 0] * iwh[..., 1]
    ap = (boxes_pred[..., 2] - boxes_pred[..., 0]) * (boxes_pred[..., 3] - boxes_pred[..., 1])
    ag = (boxes_gt[..., 2] - boxes_gt[..., 0]) * (boxes_gt[..., 3] - boxes_gt[..., 1])
    conf_gt = inter / (ap + ag - inter + IOU_EPS)

    cls_gt = labels[:, :, 1].astype(jnp.int32)
    t_gt = labels[:, :, 2:6]
    scale_gt = labels[:, :, 6]
    neg = (scale_gt < 0.0).astype(jnp.float32)
    pos = (scale_gt > 0.0).astype(jnp.float32)

    no_obj = jnp.sum(conf_pred ** 2 * neg) / B
    coord = jnp.sum(jnp.sum((t_gt - t_pred_flat) ** 2, -1) * pos * scale_gt) / B
    obj_conf = jnp.sum((conf_pred - conf_gt) ** 2 * pos) / B
    lse = jax.scipy.special.logsumexp(cls_pred, axis=-1)
    picked = jnp.take_along_axis(cls_pred, cls_gt[..., None], axis=-1)[..., 0]
    cls_loss = jnp.sum(lse - picked) / B
    return no_obj + coord + obj_conf + cls_loss


if __name__ == "__main__":
    key = jax.random.PRNGKey(0)
    B = 2
    input_size, stride = 128, 32
    hs = ws = input_size // stride
    HW = hs * ws
    A, C = ANCHORS_NUM, VOC_CLASSES_LEN
    N = HW * A

    k1, k2, k3, k4, k5, k6, k7 = jax.random.split(key, 7)
    pred = jax.random.normal(k1, (B, HW, A * (1 + C + 4)), dtype=jnp.float32) * 0.5

    obj = jax.random.bernoulli(k2, 0.3, (B, N, 1)).astype(jnp.float32)
    cls_idx = jax.random.randint(k3, (B, N, 1), 0, C).astype(jnp.float32)
    t_gt = jax.random.normal(k4, (B, N, 4), dtype=jnp.float32) * 0.5
    scale = jax.random.uniform(k5, (B, N, 1), minval=-1.0, maxval=2.0)
    cxy = jax.random.uniform(k6, (B, N, 2), minval=0.1, maxval=0.9)
    wh = jax.random.uniform(k7, (B, N, 2), minval=0.05, maxval=0.3)
    boxes_gt = jnp.concatenate([cxy - wh * 0.5, cxy + wh * 0.5], axis=-1)
    labels = jnp.concatenate([obj, cls_idx, t_gt, scale, boxes_gt], axis=-1)  # [B,N,11]

    loss = yolo_v2_loss(pred, labels, input_size=input_size, stride=stride)
    jax.block_until_ready(loss)

    ref = _ref_loss(pred, labels, input_size=input_size, stride=stride)
    # tolerance covers the EUP approx-reciprocal in the IoU and tiled-sum order
    assert jnp.allclose(loss, ref, rtol=2e-3, atol=1e-2), (loss, ref)

    print("KERNEL_OK")
</pallas_src>

<mosaic_0001>
module attributes {stable_mosaic.version = 11 : i64} {
  func.func @_yolo_loss_kernel(%arg0: i32, %arg1: i32, %arg2: memref<1x16x128xf32, #tpu.memory_space<vmem>>, %arg3: memref<1x20x128xf32, #tpu.memory_space<vmem>>, %arg4: memref<4x128xf32, #tpu.memory_space<vmem>>, %arg5: memref<1x1x1x128xf32, #tpu.memory_space<vmem>>) attributes {dimension_semantics = [#tpu.dimension_semantics<parallel>, #tpu.dimension_semantics<parallel>], iteration_bounds = array<i64: 2, 1>, scalar_prefetch = 0 : i64, scratch_operands = 0 : i64, tpu.core_type = #tpu.core_type<tc>, window_params = [{transform_indices = @transform_0, window_bounds = array<i64: 1, 16, 128>}, {transform_indices = @transform_1, window_bounds = array<i64: 1, 20, 128>}, {transform_indices = @transform_2, window_bounds = array<i64: 4, 128>}, {transform_indices = @transform_3, window_bounds = array<i64: 1, 1, 1, 128>}]} {
    %c0 = arith.constant 0 : index
    %c0_0 = arith.constant 0 : index
    %c0_1 = arith.constant 0 : index
    %0 = vector.load %arg2[%c0, %c0_0, %c0_1] : memref<1x16x128xf32, #tpu.memory_space<vmem>>, vector<1x16x128xf32>
    %1 = vector.shape_cast %0 : vector<1x16x128xf32> to vector<16x128xf32>
    %c0_2 = arith.constant 0 : index
    %c0_3 = arith.constant 0 : index
    %c0_4 = arith.constant 0 : index
    %2 = vector.load %arg3[%c0_2, %c0_3, %c0_4] : memref<1x20x128xf32, #tpu.memory_space<vmem>>, vector<1x20x128xf32>
    %3 = vector.shape_cast %2 : vector<1x20x128xf32> to vector<20x128xf32>
    %c0_5 = arith.constant 0 : index
    %c0_6 = arith.constant 0 : index
    %4 = vector.load %arg4[%c0_5, %c0_6] : memref<4x128xf32, #tpu.memory_space<vmem>>, vector<4x128xf32>
    %5 = vector.extract_strided_slice %1 {offsets = [0, 0], sizes = [1, 128], strides = [1, 1]} : vector<16x128xf32> to vector<1x128xf32>
    %6 = vector.extract_strided_slice %1 {offsets = [1, 0], sizes = [1, 128], strides = [1, 1]} : vector<16x128xf32> to vector<1x128xf32>
    %7 = vector.extract_strided_slice %1 {offsets = [2, 0], sizes = [1, 128], strides = [1, 1]} : vector<16x128xf32> to vector<1x128xf32>
    %8 = vector.extract_strided_slice %1 {offsets = [3, 0], sizes = [1, 128], strides = [1, 1]} : vector<16x128xf32> to vector<1x128xf32>
    %9 = vector.extract_strided_slice %1 {offsets = [8, 0], sizes = [1, 128], strides = [1, 1]} : vector<16x128xf32> to vector<1x128xf32>
    %10 = vector.extract_strided_slice %1 {offsets = [9, 0], sizes = [1, 128], strides = [1, 1]} : vector<16x128xf32> to vector<1x128xf32>
    %11 = vector.extract_strided_slice %1 {offsets = [10, 0], sizes = [1, 128], strides = [1, 1]} : vector<16x128xf32> to vector<1x128xf32>
    %12 = vector.extract_strided_slice %1 {offsets = [11, 0], sizes = [1, 128], strides = [1, 1]} : vector<16x128xf32> to vector<1x128xf32>
    %13 = vector.extract_strided_slice %1 {offsets = [12, 0], sizes = [1, 128], strides = [1, 1]} : vector<16x128xf32> to vector<1x128xf32>
    %14 = vector.extract_strided_slice %1 {offsets = [13, 0], sizes = [1, 128], strides = [1, 1]} : vector<16x128xf32> to vector<1x128xf32>
    %15 = vector.extract_strided_slice %1 {offsets = [14, 0], sizes = [1, 128], strides = [1, 1]} : vector<16x128xf32> to vector<1x128xf32>
    %16 = vector.extract_strided_slice %1 {offsets = [15, 0], sizes = [1, 128], strides = [1, 1]} : vector<16x128xf32> to vector<1x128xf32>
    %17 = vector.extract_strided_slice %4 {offsets = [0, 0], sizes = [1, 128], strides = [1, 1]} : vector<4x128xf32> to vector<1x128xf32>
    %18 = vector.extract_strided_slice %4 {offsets = [1, 0], sizes = [1, 128], strides = [1, 1]} : vector<4x128xf32> to vector<1x128xf32>
    %19 = vector.extract_strided_slice %4 {offsets = [2, 0], sizes = [1, 128], strides = [1, 1]} : vector<4x128xf32> to vector<1x128xf32>
    %20 = vector.extract_strided_slice %4 {offsets = [3, 0], sizes = [1, 128], strides = [1, 1]} : vector<4x128xf32> to vector<1x128xf32>
    %21 = arith.negf %5 : vector<1x128xf32>
    %22 = math.exp %21 : vector<1x128xf32>
    %cst = arith.constant 1.000000e+00 : f32
    %23 = vector.broadcast %cst : f32 to vector<1x128xf32>
    %24 = arith.addf %23, %22 : vector<1x128xf32>
    %25 = arith.divf %23, %24 : vector<1x128xf32>
    %26 = arith.addf %25, %17 : vector<1x128xf32>
    %cst_7 = arith.constant 3.200000e+01 : f32
    %27 = vector.broadcast %cst_7 : f32 to vector<1x128xf32>
    %28 = arith.mulf %26, %27 : vector<1x128xf32>
    %29 = arith.negf %6 : vector<1x128xf32>
    %30 = math.exp %29 : vector<1x128xf32>
    %cst_8 = arith.constant 1.000000e+00 : f32
    %31 = vector.broadcast %cst_8 : f32 to vector<1x128xf32>
    %32 = arith.addf %31, %30 : vector<1x128xf32>
    %33 = arith.divf %31, %32 : vector<1x128xf32>
    %34 = arith.addf %33, %18 : vector<1x128xf32>
    %cst_9 = arith.constant 3.200000e+01 : f32
    %35 = vector.broadcast %cst_9 : f32 to vector<1x128xf32>
    %36 = arith.mulf %34, %35 : vector<1x128xf32>
    %37 = math.exp %7 : vector<1x128xf32>
    %38 = arith.addf %37, %19 : vector<1x128xf32>
    %cst_10 = arith.constant 3.200000e+01 : f32
    %39 = vector.broadcast %cst_10 : f32 to vector<1x128xf32>
    %40 = arith.mulf %38, %39 : vector<1x128xf32>
    %41 = math.exp %8 : vector<1x128xf32>
    %42 = arith.addf %41, %20 : vector<1x128xf32>
    %cst_11 = arith.constant 3.200000e+01 : f32
    %43 = vector.broadcast %cst_11 : f32 to vector<1x128xf32>
    %44 = arith.mulf %42, %43 : vector<1x128xf32>
    %cst_12 = arith.constant 5.000000e-01 : f32
    %45 = vector.broadcast %cst_12 : f32 to vector<1x128xf32>
    %46 = arith.mulf %45, %40 : vector<1x128xf32>
    %47 = arith.subf %28, %46 : vector<1x128xf32>
    %cst_13 = arith.constant 7.812500e-03 : f32
    %48 = vector.broadcast %cst_13 : f32 to vector<1x128xf32>
    %49 = arith.mulf %47, %48 : vector<1x128xf32>
    %cst_14 = arith.constant 5.000000e-01 : f32
    %50 = vector.broadcast %cst_14 : f32 to vector<1x128xf32>
    %51 = arith.mulf %50, %44 : vector<1x128xf32>
    %52 = arith.subf %36, %51 : vector<1x128xf32>
    %cst_15 = arith.constant 7.812500e-03 : f32
    %53 = vector.broadcast %cst_15 : f32 to vector<1x128xf32>
    %54 = arith.mulf %52, %53 : vector<1x128xf32>
    %cst_16 = arith.constant 5.000000e-01 : f32
    %55 = vector.broadcast %cst_16 : f32 to vector<1x128xf32>
    %56 = arith.mulf %55, %40 : vector<1x128xf32>
    %57 = arith.addf %28, %56 : vector<1x128xf32>
    %cst_17 = arith.constant 7.812500e-03 : f32
    %58 = vector.broadcast %cst_17 : f32 to vector<1x128xf32>
    %59 = arith.mulf %57, %58 : vector<1x128xf32>
    %cst_18 = arith.constant 5.000000e-01 : f32
    %60 = vector.broadcast %cst_18 : f32 to vector<1x128xf32>
    %61 = arith.mulf %60, %44 : vector<1x128xf32>
    %62 = arith.addf %36, %61 : vector<1x128xf32>
    %cst_19 = arith.constant 7.812500e-03 : f32
    %63 = vector.broadcast %cst_19 : f32 to vector<1x128xf32>
    %64 = arith.mulf %62, %63 : vector<1x128xf32>
    %65 = arith.maximumf %49, %12 : vector<1x128xf32>
    %66 = arith.maximumf %54, %13 : vector<1x128xf32>
    %67 = arith.minimumf %59, %14 : vector<1x128xf32>
    %68 = arith.minimumf %64, %15 : vector<1x128xf32>
    %69 = arith.subf %67, %65 : vector<1x128xf32>
    %cst_20 = arith.constant 0.000000e+00 : f32
    %70 = vector.broadcast %cst_20 : f32 to vector<1x128xf32>
    %71 = arith.maximumf %69, %70 : vector<1x128xf32>
    %72 = arith.subf %68, %66 : vector<1x128xf32>
    %cst_21 = arith.constant 0.000000e+00 : f32
    %73 = vector.broadcast %cst_21 : f32 to vector<1x128xf32>
    %74 = arith.maximumf %72, %73 : vector<1x128xf32>
    %75 = arith.mulf %71, %74 : vector<1x128xf32>
    %76 = arith.subf %59, %49 : vector<1x128xf32>
    %77 = arith.subf %64, %54 : vector<1x128xf32>
    %78 = arith.mulf %76, %77 : vector<1x128xf32>
    %79 = arith.subf %14, %12 : vector<1x128xf32>
    %80 = arith.subf %15, %13 : vector<1x128xf32>
    %81 = arith.mulf %79, %80 : vector<1x128xf32>
    %82 = arith.addf %78, %81 : vector<1x128xf32>
    %83 = arith.subf %82, %75 : vector<1x128xf32>
    %cst_22 = arith.constant 9.99999982E-15 : f32
    %84 = vector.broadcast %cst_22 : f32 to vector<1x128xf32>
    %85 = arith.addf %83, %84 : vector<1x128xf32>
    %86 = tpu.reciprocal %85 {approx = true} : vector<1x128xf32> -> vector<1x128xf32>
    %87 = arith.mulf %75, %86 : vector<1x128xf32>
    %cst_23 = arith.constant 0.000000e+00 : f32
    %88 = vector.broadcast %cst_23 : f32 to vector<1x128xf32>
    %89 = arith.cmpf olt, %11, %88 : vector<1x128xf32>
    %90 = arith.extui %89 : vector<1x128xi1> to vector<1x128xi32>
    %91 = arith.sitofp %90 : vector<1x128xi32> to vector<1x128xf32>
    %cst_24 = arith.constant 0.000000e+00 : f32
    %92 = vector.broadcast %cst_24 : f32 to vector<1x128xf32>
    %93 = arith.cmpf ogt, %11, %92 : vector<1x128xf32>
    %94 = arith.extui %93 : vector<1x128xi1> to vector<1x128xi32>
    %95 = arith.sitofp %94 : vector<1x128xi32> to vector<1x128xf32>
    %96 = arith.mulf %9, %9 : vector<1x128xf32>
    %97 = arith.mulf %96, %91 : vector<1x128xf32>
    %98 = arith.subf %9, %87 : vector<1x128xf32>
    %99 = arith.mulf %98, %98 : vector<1x128xf32>
    %100 = arith.mulf %99, %95 : vector<1x128xf32>
    %101 = vector.extract_strided_slice %1 {offsets = [4, 0], sizes = [4, 128], strides = [1, 1]} : vector<16x128xf32> to vector<4x128xf32>
    %102 = vector.extract_strided_slice %1 {offsets = [0, 0], sizes = [4, 128], strides = [1, 1]} : vector<16x128xf32> to vector<4x128xf32>
    %103 = arith.subf %101, %102 : vector<4x128xf32>
    %104 = arith.mulf %103, %103 : vector<4x128xf32>
    %cst_25 = arith.constant dense<0.000000e+00> : vector<128xf32>
    %105 = vector.multi_reduction <add>, %104, %cst_25 [0] : vector<4x128xf32> to vector<128xf32>
    %106 = vector.shape_cast %105 : vector<128xf32> to vector<1x128xf32>
    %107 = arith.mulf %106, %95 : vector<1x128xf32>
    %108 = arith.mulf %107, %11 : vector<1x128xf32>
    %cst_26 = arith.constant dense<0xFF800000> : vector<128xf32>
    %109 = vector.multi_reduction <maximumf>, %3, %cst_26 [0] : vector<20x128xf32> to vector<128xf32>
    %110 = vector.shape_cast %109 : vector<128xf32> to vector<1x128xf32>
    %111 = vector.broadcast %110 : vector<1x128xf32> to vector<20x128xf32>
    %112 = arith.subf %3, %111 : vector<20x128xf32>
    %113 = math.exp %112 : vector<20x128xf32>
    %cst_27 = arith.constant dense<0.000000e+00> : vector<128xf32>
    %114 = vector.multi_reduction <add>, %113, %cst_27 [0] : vector<20x128xf32> to vector<128xf32>
    %115 = vector.shape_cast %114 : vector<128xf32> to vector<1x128xf32>
    %116 = math.log %115 : vector<1x128xf32>
    %117 = arith.addf %110, %116 : vector<1x128xf32>
    %118 = tpu.iota {dimensions = array<i32: 0>} : vector<20x128xi32>
    %119 = arith.sitofp %118 : vector<20x128xi32> to vector<20x128xf32>
    %120 = vector.broadcast %10 : vector<1x128xf32> to vector<20x128xf32>
    %121 = arith.cmpf oeq, %119, %120 : vector<20x128xf32>
    %cst_28 = arith.constant 0.000000e+00 : f32
    %122 = vector.broadcast %cst_28 : f32 to vector<20x128xf32>
    %123 = arith.select %121, %3, %122 : vector<20x128xi1>, vector<20x128xf32>
    %cst_29 = arith.constant dense<0.000000e+00> : vector<128xf32>
    %124 = vector.multi_reduction <add>, %123, %cst_29 [0] : vector<20x128xf32> to vector<128xf32>
    %125 = vector.shape_cast %124 : vector<128xf32> to vector<1x128xf32>
    %126 = arith.subf %117, %125 : vector<1x128xf32>
    %127 = arith.mulf %126, %16 : vector<1x128xf32>
    %128 = arith.addf %97, %100 : vector<1x128xf32>
    %129 = arith.addf %128, %108 : vector<1x128xf32>
    %130 = arith.addf %129, %127 : vector<1x128xf32>
    %131 = vector.shape_cast %130 : vector<1x128xf32> to vector<1x1x128xf32>
    %cst_30 = arith.constant dense<0.000000e+00> : vector<1xf32>
    %132 = vector.multi_reduction <add>, %131, %cst_30 [1, 2] : vector<1x1x128xf32> to vector<1xf32>
    %133 = vector.shape_cast %132 : vector<1xf32> to vector<1x1x1xf32>
    %134 = vector.extract %133[0, 0, 0] : f32 from vector<1x1x1xf32>
    %135 = tpu.iota {dimensions = array<i32: 1>} : vector<1x128xi32>
    %c0_i32 = arith.constant 0 : i32
    %136 = vector.broadcast %c0_i32 : i32 to vector<1x128xi32>
    %137 = arith.cmpi eq, %135, %136 : vector<1x128xi32>
    %cst_31 = arith.constant 0.000000e+00 : f32
    %138 = vector.broadcast %134 : f32 to vector<1x128xf32>
    %139 = vector.broadcast %cst_31 : f32 to vector<1x128xf32>
    %140 = arith.select %137, %138, %139 : vector<1x128xi1>, vector<1x128xf32>
    %c0_32 = arith.constant 0 : index
    %c0_33 = arith.constant 0 : index
    %c0_34 = arith.constant 0 : index
    %c0_35 = arith.constant 0 : index
    %141 = vector.load %arg5[%c0_32, %c0_33, %c0_34, %c0_35] : memref<1x1x1x128xf32, #tpu.memory_space<vmem>>, vector<1x1x1x128xf32>
    %142 = vector.shape_cast %141 : vector<1x1x1x128xf32> to vector<1x128xf32>
    %143 = vector.shape_cast %140 : vector<1x128xf32> to vector<1x1x1x128xf32>
    tpu.vector_store %arg5[%c0_32, %c0_33, %c0_34, %c0_35], %143 {strides = array<i32>} : memref<1x1x1x128xf32, #tpu.memory_space<vmem>>, vector<1x1x1x128xf32>,
    return
  }
  func.func @transform_0(%arg0: i32, %arg1: i32) -> (i32, i32, i32) {
    %c0_i32 = arith.constant 0 : i32
    %c0_i32_0 = arith.constant 0 : i32
    return %arg0, %c0_i32, %arg1 : i32, i32, i32
  }
  func.func @transform_1(%arg0: i32, %arg1: i32) -> (i32, i32, i32) {
    %c0_i32 = arith.constant 0 : i32
    %c0_i32_0 = arith.constant 0 : i32
    return %arg0, %c0_i32, %arg1 : i32, i32, i32
  }
  func.func @transform_2(%arg0: i32, %arg1: i32) -> (i32, i32) {
    %c0_i32 = arith.constant 0 : i32
    %c0_i32_0 = arith.constant 0 : i32
    return %c0_i32, %arg1 : i32, i32
  }
  func.func @transform_3(%arg0: i32, %arg1: i32) -> (i32, i32, i32, i32) {
    %c0_i32 = arith.constant 0 : i32
    %c0_i32_0 = arith.constant 0 : i32
    %c0_i32_1 = arith.constant 0 : i32
    return %arg0, %arg1, %c0_i32, %c0_i32_0 : i32, i32, i32, i32
  }
}

</mosaic_0001>

<llo_original>
// kernel: tpu_custom_call.1
$region0: #{tpu_custom_call.1}
  #allocation0 [shape = 'u32[]', space=smem, size = 0x4, offset = 0x4, fixed_abs, tag = 'smem constant byte address 0x4 - core index']
  #allocation1 [shape = 'u32[144,128]{1,0:T(1,128)}', space=vmem, size = 0x12000, scoped, tag = 'internal scratch']
  %s0 = inlined_call_operand.vmem [shape: f32[2,16,128], index: 0, kind: input, shape index: {}]
  %s1 = inlined_call_operand.vmem [shape: f32[2,20,128], index: 1, kind: input, shape index: {}]
  %s2 = inlined_call_operand.vmem [shape: f32[4,128], index: 2, kind: input, shape index: {}]
  %s3 = inlined_call_operand.hbm [shape: f32[2,1,1,128], index: 3, kind: output, shape index: {}]
  %s4 = sld [smem:[#allocation0]]
  $region45: #{tpu_custom_call.1} parent=0
    _
  %s6 = ssub.s32 1, %s4
  %s7 = scalar_select 0, %s6, %s4
  $region1: #{tpu_custom_call.1} parent=0
    #allocation2 [shape = 'u8[1024]{0}', space=vmem, size = 0x400, scoped, tag = 'output window, operand 0']
    #allocation3 [shape = 's32[2]{0}', space=sflag, size = 0x8, scoped, tag = 'scoped memory for tpu_custom_call.1']
    %8 = vsyncpa [#allocation3], 0
    %s9 = scalar_lea.sflag [#allocation3], 1
    %10 = vsyncpa %s9, 0
    loop: start=0, step=1, limit=4
    $region2: #{tpu_custom_call.1} parent=1 // loop_pre_header
      _
    $region3: #{tpu_custom_call.1} parent=1 // loop_header
      %s12 = sphi 0, %s16
      %p13 = scmp.ge.s32.totalorder %s12, 4
      %s19 = sphi 0, %s31
      %s20 = sphi 0, %s27
      %s21 = sphi 0, %s19
      %s22 = sphi 0, %s20
      %s23 = sphi 0, %s21
      %s24 = sphi 0, %s22
      %s36 = sphi 0, %s38
      %s39 = sphi 0, %s36
      %s40 = sphi 0, %s39
      %s56 = sphi 0, %s40
      %s64 = sphi 0, %s66
      %s67 = sphi 0, %s64
      %s68 = sphi 0, %s67
      %s84 = sphi 0, %s68
      %s90 = sphi 0, %s92
      %s93 = sphi 0, %s90
      %s94 = sphi 0, %s93
      %s110 = sphi 0, %s94
      %s118 = sphi 0, %s120
      %s121 = sphi 0, %s118
      %s122 = sphi 0, %s121
      %s138 = sphi 0, %s122
    $region4: #{tpu_custom_call.1} parent=1 // loop_header_branch
      %15 = sbr.rel (%p13) target = $region8
    $region5: #{tpu_custom_call.1} parent=1 // loop_body
      %s17 = ssub.s32 %s12, 1
      %s18 = ssub.s32 %s12, 2
      %s25 = sadd.s32 1, %s20
      %p26 = scmp.ge.s32.totalorder %s25, 1
      %s27 = scalar_select %p26, 0, %s25
      %s28 = sadd.s32 1, %s19
      %s29 = scalar_select %p26, %s28, %s19
      %p30 = scmp.ge.s32.totalorder %s29, 2
      %s31 = scalar_select %p30, 0, %s29
      %s32 = ssub.s32 %s19, %s31
      %s33 = ssub.s32 %s20, %s27
      %s34 = sor.u32 %s32, %s33
      %p35 = scmp.eq.s32.totalorder %s34, 0
      %s37 = sadd.s32 %s36, 1
      %s38 = scalar_select %p35, %s36, %s37
      %p41 = pneg %p35
      %p42 = scmp.eq.s32.totalorder %s12, 1
      %p43 = por %p41, %p42
      %p44 = scmp.ne.s32.totalorder %s36, %s39
      %p45 = scmp.eq.s32.totalorder %s12, 0
      %p46 = por %p44, %p45
      %p47 = scmp.ne.s32.totalorder %s36, %s39
      %p48 = scmp.eq.s32.totalorder %s17, 1
      %p49 = por %p47, %p48
      %p50 = scmp.ne.s32.totalorder %s39, %s40
      %p51 = scmp.eq.s32.totalorder %s17, 0
      %p52 = por %p50, %p51
      %p53 = scmp.ne.s32.totalorder %s39, %s40
      %p54 = scmp.eq.s32.totalorder %s18, 1
      %p55 = por %p53, %p54
      %p57 = scmp.ne.s32.totalorder %s40, %s56
      %p58 = scmp.eq.s32.totalorder %s18, 0
      %p59 = por %p57, %p58
      %s60 = ssub.s32 %s19, %s31
      %s61 = ssub.s32 %s20, %s27
      %s62 = sor.u32 %s60, %s61
      %p63 = scmp.eq.s32.totalorder %s62, 0
      %s65 = sadd.s32 %s64, 1
      %s66 = scalar_select %p63, %s64, %s65
      %p69 = pneg %p63
      %p70 = scmp.eq.s32.totalorder %s12, 1
      %p71 = por %p69, %p70
      %p72 = scmp.ne.s32.totalorder %s64, %s67
      %p73 = scmp.eq.s32.totalorder %s12, 0
      %p74 = por %p72, %p73
      %p75 = scmp.ne.s32.totalorder %s64, %s67
      %p76 = scmp.eq.s32.totalorder %s17, 1
      %p77 = por %p75, %p76
      %p78 = scmp.ne.s32.totalorder %s67, %s68
      %p79 = scmp.eq.s32.totalorder %s17, 0
      %p80 = por %p78, %p79
      %p81 = scmp.ne.s32.totalorder %s67, %s68
      %p82 = scmp.eq.s32.totalorder %s18, 1
      %p83 = por %p81, %p82
      %p85 = scmp.ne.s32.totalorder %s68, %s84
      %p86 = scmp.eq.s32.totalorder %s18, 0
      %p87 = por %p85, %p86
      %s88 = ssub.s32 %s20, %s27
      %p89 = scmp.eq.s32.totalorder %s88, 0
      %s91 = sadd.s32 %s90, 1
      %s92 = scalar_select %p89, %s90, %s91
      %p95 = pneg %p89
      %p96 = scmp.eq.s32.totalorder %s12, 1
      %p97 = por %p95, %p96
      %p98 = scmp.ne.s32.totalorder %s90, %s93
      %p99 = scmp.eq.s32.totalorder %s12, 0
      %p100 = por %p98, %p99
      %p101 = scmp.ne.s32.totalorder %s90, %s93
      %p102 = scmp.eq.s32.totalorder %s17, 1
      %p103 = por %p101, %p102
      %p104 = scmp.ne.s32.totalorder %s93, %s94
      %p105 = scmp.eq.s32.totalorder %s17, 0
      %p106 = por %p104, %p105
      %p107 = scmp.ne.s32.totalorder %s93, %s94
      %p108 = scmp.eq.s32.totalorder %s18, 1
      %p109 = por %p107, %p108
      %p111 = scmp.ne.s32.totalorder %s94, %s110
      %p112 = scmp.eq.s32.totalorder %s18, 0
      %p113 = por %p111, %p112
      %s114 = ssub.s32 %s19, %s31
      %s115 = ssub.s32 %s20, %s27
      %s116 = sor.u32 %s114, %s115
      %p117 = scmp.eq.s32.totalorder %s116, 0
      %s119 = sadd.s32 %s118, 1
      %s120 = scalar_select %p117, %s118, %s119
      %p123 = pneg %p117
      %p124 = scmp.eq.s32.totalorder %s12, 1
      %p125 = por %p123, %p124
      %p126 = scmp.ne.s32.totalorder %s118, %s121
      %p127 = scmp.eq.s32.totalorder %s12, 0
      %p128 = por %p126, %p127
      %p129 = scmp.ne.s32.totalorder %s118, %s121
      %p130 = scmp.eq.s32.totalorder %s17, 1
      %p131 = por %p129, %p130
      %p132 = scmp.ne.s32.totalorder %s121, %s122
      %p133 = scmp.eq.s32.totalorder %s17, 0
      %p134 = por %p132, %p133
      %p135 = scmp.ne.s32.totalorder %s121, %s122
      %p136 = scmp.eq.s32.totalorder %s18, 1
      %p137 = por %p135, %p136
      %p139 = scmp.ne.s32.totalorder %s122, %s138
      %p140 = scmp.eq.s32.totalorder %s18, 0
      %p141 = por %p139, %p140
      %p142 = scmp.le.s32.totalorder 1, %s12
      %p143 = scmp.lt.s32.totalorder %s12, 3
      %p144 = pnand %p142, %p143
      %p145 = pneg %p144
      // Predicated region
      $region9: #{tpu_custom_call.1} parent=5 // pred_check
        _
      $region10: #{tpu_custom_call.1} parent=5 // pred_check_branch
        %147 = sbr.rel (%p144) target = $region12
      $region11: #{tpu_custom_call.1} parent=5 // pred_region
        %s148 = ssub.s32 %s12, 1
        // Predicated region
        $region13: #{tpu_custom_call.1} parent=11 // pred_check
          %p149 = pneg %p106
        $region14: #{tpu_custom_call.1} parent=11 // pred_check_branch
          %151 = sbr.rel (%p149) target = $region16
        $region15: #{tpu_custom_call.1} parent=11 // pred_region
          %p152 = scmp.lt.s32.totalorder %s22, 0
          %s153 = scalar_select %p152, %s22, 0
          %s154 = smul.addr %s153, 4
          %s155 = scalar_lea.vmem %s2, %s154
        $region16: #{tpu_custom_call.1} parent=11 // pred_fallthru
          _
      $region12: #{tpu_custom_call.1} parent=5 // pred_fallthru
        _
      %p156 = scmp.lt.s32.totalorder %s12, 2
      // Predicated region
      $region17: #{tpu_custom_call.1} parent=5 // pred_check
        %p157 = pneg %p156
      $region18: #{tpu_custom_call.1} parent=5 // pred_check_branch
        %159 = sbr.rel (%p157) target = $region20
      $region19: #{tpu_custom_call.1} parent=5 // pred_region
        // Predicated region
        $region21: #{tpu_custom_call.1} parent=19 // pred_check
          %p160 = pneg %p46
        $region22: #{tpu_custom_call.1} parent=19 // pred_check_branch
          %162 = sbr.rel (%p160) target = $region24
        $region23: #{tpu_custom_call.1} parent=19 // pred_region
          %p163 = scmp.lt.s32.totalorder %s19, 1
          %s164 = scalar_select %p163, %s19, 1
          %p165 = scmp.lt.s32.totalorder %s20, 0
          %s166 = scalar_select %p165, %s20, 0
          %s167 = smul.addr %s164, 2
          %s168 = sadd.s32 %s166, %s167
          %s169 = smul.addr %s168, 8
          %s170 = scalar_lea.vmem %s0, %s169
        $region24: #{tpu_custom_call.1} parent=19 // pred_fallthru
          _
        // Predicated region
        $region25: #{tpu_custom_call.1} parent=19 // pred_check
          %p171 = pneg %p74
        $region26: #{tpu_custom_call.1} parent=19 // pred_check_branch
          %173 = sbr.rel (%p171) target = $region28
        $region27: #{tpu_custom_call.1} parent=19 // pred_region
          %p174 = scmp.lt.s32.totalorder %s19, 1
          %s175 = scalar_select %p174, %s19, 1
          %p176 = scmp.lt.s32.totalorder %s20, 0
          %s177 = scalar_select %p176, %s20, 0
          %s178 = smul.addr %s175, 3
          %s179 = sadd.s32 %s177, %s178
          %s180 = smul.addr %s179, 8
          %s181 = scalar_lea.vmem %s1, %s180
        $region28: #{tpu_custom_call.1} parent=19 // pred_fallthru
          _
      $region20: #{tpu_custom_call.1} parent=5 // pred_fallthru
        _
      %p182 = scmp.le.s32.totalorder 1, %s12
      %p183 = scmp.lt.s32.totalorder %s12, 3
      %p184 = pnand %p182, %p183
      %p185 = pneg %p184
      // Predicated region
      $region29: #{tpu_custom_call.1} parent=5 // pred_check
        _
      $region30: #{tpu_custom_call.1} parent=5 // pred_check_branch
        %187 = sbr.rel (%p184) target = $region32
      $region31: #{tpu_custom_call.1} parent=5 // pred_region
        %s188 = ssub.s32 %s12, 1
        %p189 = scmp.lt.s32.totalorder %s21, 1
        %s190 = scalar_select %p189, %s21, 1
        %p191 = scmp.lt.s32.totalorder %s22, 0
        %s192 = scalar_select %p191, %s22, 0
        %s193 = smul.addr %s190, 2
        %s194 = sadd.s32 %s192, %s193
        %s195 = smul.addr %s194, 8
        %s196 = scalar_lea.vmem %s0, %s195
        %p197 = pneg %p52
        %p198 = pneg %p49
        %p199 = scmp.lt.s32.totalorder %s21, 1
        %s200 = scalar_select %p199, %s21, 1
        %p201 = scmp.lt.s32.totalorder %s22, 0
        %s202 = scalar_select %p201, %s22, 0
        %s203 = smul.addr %s200, 3
        %s204 = sadd.s32 %s202, %s203
        %s205 = smul.addr %s204, 8
        %s206 = scalar_lea.vmem %s1, %s205
        %p207 = pneg %p80
        %p208 = pneg %p77
        %p209 = scmp.lt.s32.totalorder %s22, 0
        %s210 = scalar_select %p209, %s22, 0
        %s211 = smul.addr %s210, 4
        %s212 = scalar_lea.vmem %s2, %s211
        %p213 = pneg %p106
        %p214 = pneg %p103
        %p215 = pneg %p134
        %p216 = pneg %p131
        %s217 = sand.u32 %s121, 1
        %s218 = scalar_lea.sflag [#allocation3], %s217
        %s219 = sand.u32 %s121, 1
        %s220 = scalar_lea.vmem [#allocation2], %s219
        %p221 = scmp.lt.s32.totalorder %s21, 1
        %s222 = scalar_select %p221, %s21, 1
        %p223 = scmp.lt.s32.totalorder %s22, 0
        %s224 = scalar_select %p223, %s22, 0
        %s225 = smul.addr %s222, 2
        %s226 = sadd.s32 %s224, %s225
        %s227 = smul.addr %s226, 8
        %s228 = scalar_lea.vmem %s0, %s227
        %p229 = scmp.lt.s32.totalorder %s21, 1
        %s230 = scalar_select %p229, %s21, 1
        %p231 = scmp.lt.s32.totalorder %s22, 0
        %s232 = scalar_select %p231, %s22, 0
        %s233 = smul.addr %s230, 3
        %s234 = sadd.s32 %s232, %s233
        %s235 = smul.addr %s234, 8
        %s236 = scalar_lea.vmem %s1, %s235
        %p237 = scmp.lt.s32.totalorder %s22, 0
        %s238 = scalar_select %p237, %s22, 0
        %s239 = smul.addr %s238, 4
        %s240 = scalar_lea.vmem %s2, %s239
        %v241 = vld [vmem:[%s228] sm:$0xff]
        %v242 = vld [vmem:[%s228 + $0x8] sm:$0xff]
        %v243 = vld [vmem:[%s236] sm:$0xff]
        %v244 = vld [vmem:[%s236 + $0x8] sm:$0xff]
        %v245 = vld [vmem:[%s236 + $0x10] sm:$0xf]
        %v246 = vld [vmem:[%s240] sm:$0xf]
        %v247 = vxor.u32 %v241, 2147483648
        %v248 = vmul.f32 %v247, 1.442695
        %v249 = vpow.pop %v248
        %v250 = vadd.f32 %v249, 1.0
        %v251 = vrcp.pop %v250
        %v252 = vmul.f32 1.0, %v251
        %v253 = vadd.f32 %v252, %v246
        %v254 = vmul.f32 %v253, 32.0
        %v255 = vmul.f32 %v241, 1.442695
        %v256 = vpow.pop %v255
        %v257 = vadd.f32 %v256, %v246
        %v258 = vmul.f32 %v257, 32.0
        %v259 = vmul.f32 %v258, 0.5
        %v261 = vrot.slane %v259, 2
        %v263 = vsub.f32 %v254, %v261
        %v264 = vmul.f32 %v263, 0.0078125
        %v265 = vadd.f32 %v254, %v261
        %v266 = vmul.f32 %v265, 0.0078125
        %v268 = vrot.slane %v242, 3
        %v270 = vmax.f32 %v264, %v268
        %v271 = vrot.slane %v242, 5
        %v273 = vmin.f32 %v266, %v271
        %v274 = vsub.f32 %v273, %v270
        %v275 = vmax.f32 %v274, 0.0
        %v277 = vrot.slane %v275, 1
        %v279 = vmul.f32 %v275, %v277
        %v280 = vsub.f32 %v266, %v264
        %v282 = vrot.slane %v280, 1
        %v284 = vmul.f32 %v280, %v282
        %v285 = vrot.slane %v242, 6
        %v287 = vsub.f32 %v242, %v285
        %v289 = vrot.slane %v287, 1
        %v291 = vmul.f32 %v287, %v289
        %v293 = vrot.slane %v291, 5
        %v295 = vadd.f32 %v284, %v293
        %v296 = vsub.f32 %v295, %v279
        %v297 = vadd.f32 %v296, 1e-14
        %v298 = vrcp.pop %v297
        %v299 = vmul.f32 %v279, %v298
        %vm300 = vcmp.lt.f32.partialorder %v242, 0.0
        %v301 = vsel %vm300, 1, 0
        %v302 = vcvt.s32.f32 %v301
        %vm303 = vcmp.gt.f32.partialorder %v242, 0.0
        %v304 = vsel %vm303, 1, 0
        %v305 = vcvt.s32.f32 %v304
        %v306 = vmul.f32 %v242, %v242
        %v308 = vrot.slane %v302, 2
        %v310 = vmul.f32 %v306, %v308
        %v311 = vsub.f32 %v242, %v299
        %v312 = vmul.f32 %v311, %v311
        %v314 = vrot.slane %v305, 2
        %v316 = vmul.f32 %v312, %v314
        %v318 = vrot.slane %v241, 4
        %v320 = vsub.f32 %v241, %v318
        %v321 = vmul.f32 %v320, %v320
        %v323 = vrot.slane %v321, 4
        %vm325 = vcmask 1043456
        %v326 = vsel %vm325, %v323, 0.0
        %v327 = vrot.slane %v326, 4
        %v328 = vadd.f32 %v326, %v327
        %v329 = vrot.slane %v328, 2
        %v330 = vadd.f32 %v328, %v329
        %v331 = vrot.slane %v330, 1
        %v332 = vadd.f32 %v330, %v331
        %v333 = vmul.f32 %v332, %v305
        %v334 = vmul.f32 %v333, %v242
        %v335 = vsel %vm325, %v245, -inf
        %v336 = vmax.f32 %v243, %v244
        %v337 = vmax.f32 %v336, %v335
        %v338 = vrot.slane %v337, 4
        %v339 = vmax.f32 %v337, %v338
        %v340 = vrot.slane %v339, 2
        %v341 = vmax.f32 %v339, %v340
        %v342 = vrot.slane %v341, 1
        %v343 = vmax.f32 %v341, %v342
        %v344 = vsub.f32 %v243, %v343
        %v345 = vsub.f32 %v244, %v343
        %v346 = vsub.f32 %v245, %v343
        %v347 = vmul.f32 %v344, 1.442695
        %v348 = vpow.pop %v347
        %v349 = vmul.f32 %v345, 1.442695
        %v350 = vpow.pop %v349
        %v351 = vmul.f32 %v346, 1.442695
        %v352 = vpow.pop %v351
        %v353 = vadd.f32 %v348, %v350
        %v354 = vsel %vm325, %v352, 0.0
        %v355 = vadd.f32 %v353, %v354
        %v356 = vrot.slane %v355, 4
        %v357 = vadd.f32 %v355, %v356
        %v358 = vrot.slane %v357, 2
        %v359 = vadd.f32 %v357, %v358
        %v360 = vrot.slane %v359, 1
        %v361 = vadd.f32 %v359, %v360
        %v362 = vlog2.pop %v361
        %v363 = vmul.f32 %v362, 0.6931472
        %v364 = vadd.f32 %v343, %v363
        %v365 = vlaneseq
        %v366 = vshrl.u32 %v365, 7
        %v367 = vadd.s32 %v366, 8
        %v368 = vadd.s32 %v366, 16
        %v369 = vcvt.s32.f32 %v366
        %v370 = vcvt.s32.f32 %v367
        %v371 = vcvt.s32.f32 %v368
        %v372 = vlaneseq
        %v373 = vshrl.u32 %v372, 7
        %v374 = vsub.s32 1, %v373
        %v375 = vrot.slane %v242, %v374
        %vm376 = vcmp.eq.f32.partialorder %v369, %v375
        %vm377 = vcmp.eq.f32.partialorder %v370, %v375
        %vm378 = vcmp.eq.f32.partialorder %v371, %v375
        %v379 = vsel %vm376, %v243, 0.0
        %v380 = vsel %vm377, %v244, 0.0
        %v381 = vsel %vm378, %v245, 0.0
        %v382 = vadd.f32 %v379, %v380
        %v383 = vsel %vm325, %v381, 0.0
        %v384 = vadd.f32 %v382, %v383
        %v385 = vrot.slane %v384, 4
        %v386 = vadd.f32 %v384, %v385
        %v387 = vrot.slane %v386, 2
        %v388 = vadd.f32 %v386, %v387
        %v389 = vrot.slane %v388, 1
        %v390 = vadd.f32 %v388, %v389
        %v391 = vsub.f32 %v364, %v390
        %v392 = vmul.f32 %v391, %v242
        %v393 = vadd.f32 %v310, %v316
        %v395 = vrot.slane %v334, 2
        %v397 = vadd.f32 %v393, %v395
        %v399 = vrot.slane %v392, 7
        %v401 = vadd.f32 %v397, %v399
        %vm402 = vcmask 1040384
        %v403 = vsel %vm402, %v401, 0.0
        %404 = vadd.xlane.f32.xlu0 %v403
        %v405 = vpop.xlane.xlu0 %404
        %v406 = vrot.slane %v405, 4
        %v407 = vadd.f32 %v405, %v406
        %v408 = vrot.slane %v407, 2
        %v409 = vadd.f32 %v407, %v408
        %v410 = vrot.slane %v409, 1
        %v411 = vadd.f32 %v409, %v410
        %s412 = vtos %v411
        %v413 = vlaneseq
        %v414 = vand.u32 %v413, 127
        %vm415 = vcmp.eq.s32.totalorder %v414, 0
        %v416 = vstv %s412
        %v417 = vsel %vm415, %v416, 0.0
        %418 = vst [vmem:[%s220] sm:$0x1] %v417
        %s419 = sand.u32 %s121, 1
        %s420 = scalar_lea.sflag [#allocation3], %s419
        %s421 = sand.u32 %s121, 1
        %s422 = scalar_lea.vmem [#allocation2], %s421
        // Predicated region
        $region33: #{tpu_custom_call.1} parent=31 // pred_check
          %p423 = pneg %p131
        $region34: #{tpu_custom_call.1} parent=31 // pred_check_branch
          %425 = sbr.rel (%p423) target = $region36
        $region35: #{tpu_custom_call.1} parent=31 // pred_region
          %s427 = ssub.s32 16, 16
          %428 = vsyncadd %s420, %s427
          %s429 = sadd.s32 %s22, %s21
          %s430 = smul.addr %s429, 16
          %s431 = scalar_lea.hbm %s3, %s430
          %s433 = sshll.u32 %s422, 4
          %s434 = int_to_ptr.vmem [resolvable:$true] %s433
          %436 = dma.vmem_to_hbm [thread:$0]  %s434, 16, %s431, %s420
        $region36: #{tpu_custom_call.1} parent=31 // pred_fallthru
          _
      $region32: #{tpu_custom_call.1} parent=5 // pred_fallthru
        _
      %p437 = scmp.le.s32.totalorder 2, %s12
      // Predicated region
      $region37: #{tpu_custom_call.1} parent=5 // pred_check
        %p438 = pneg %p437
      $region38: #{tpu_custom_call.1} parent=5 // pred_check_branch
        %440 = sbr.rel (%p438) target = $region40
      $region39: #{tpu_custom_call.1} parent=5 // pred_region
        %s441 = ssub.s32 %s12, 2
        // Predicated region
        $region41: #{tpu_custom_call.1} parent=39 // pred_check
          %p442 = pneg %p137
        $region42: #{tpu_custom_call.1} parent=39 // pred_check_branch
          %444 = sbr.rel (%p442) target = $region44
        $region43: #{tpu_custom_call.1} parent=39 // pred_region
          %s445 = sand.u32 %s122, 1
          %s446 = scalar_lea.sflag [#allocation3], %s445
          %s447 = sand.u32 %s122, 1
          %s448 = scalar_lea.vmem [#allocation2], %s447
          %449 = dma.done %s446, 16
        $region44: #{tpu_custom_call.1} parent=39 // pred_fallthru
          _
      $region40: #{tpu_custom_call.1} parent=5 // pred_fallthru
        _
    $region6: #{tpu_custom_call.1} parent=1 // loop_footer
      %s16 = sadd.s32 1, %s12
    $region7: #{tpu_custom_call.1} parent=1 // loop_footer_branch
      %11 = sbr.rel target = $region3
    $region8: #{tpu_custom_call.1} parent=1 // loop_exit
      _
    %450 = vsyncpa [#allocation3], 1
    %s451 = scalar_lea.sflag [#allocation3], 1
    %452 = vsyncpa %s451, 1

</llo_original>
